<compile_context>
chip_gen: v7x
topology: tpu7x:2x2x1
jax: 0.10.0
libtpu: 0.0.40
codegen_flags: <defaults>
</compile_context>

<pallas_src>
import jax
import jax.numpy as jnp
from jax.experimental import pallas as pl
from jax.experimental.pallas import tpu as pltpu


def mlp_kernel(x_ref, w1t_ref, b1_ref, w2_ref, b2_ref, o_ref):
    # x_ref : (in_dim, BM)    batch in lanes
    # w1t_ref: (H, in_dim)    W1 transposed (column i broadcasts against x row i)
    # b1_ref : (H, 1)
    # w2_ref : (H, out_dim)
    # b2_ref : (out_dim, 1)
    # o_ref  : (out_dim, BM)
    x = x_ref[...].astype(jnp.float32)        # (in_dim, BM)
    w1t = w1t_ref[...].astype(jnp.float32)    # (H, in_dim)
    b1 = b1_ref[...].astype(jnp.float32)      # (H, 1)
    w2 = w2_ref[...].astype(jnp.float32)      # (H, out_dim)
    b2 = b2_ref[...].astype(jnp.float32)      # (out_dim, 1)

    in_dim = x_ref.shape[0]
    out_dim = o_ref.shape[0]

    # --- Layer 1: VPU broadcast multiply-adds, then tanh on the EUP ---
    # h[j, n] = tanh( sum_i W1[i, j] * x[i, n] + b1[j] )        -> (H, BM)
    h_pre = b1                                 # (H, 1), broadcasts over lanes
    for i in range(in_dim):                    # in_dim == 2, static unroll
        h_pre = h_pre + w1t[:, i:i + 1] * x[i:i + 1, :]
    h = jnp.tanh(h_pre)                        # (H, BM)

    # --- Layer 2: per-output-row multiply + sublane reduce (XLU), no MXU ---
    # y[k, n] = sum_j W2[j, k] * h[j, n] + b2[k]                -> (out_dim, BM)
    rows = []
    for k in range(out_dim):                   # out_dim == 2, static unroll
        rows.append(jnp.sum(w2[:, k:k + 1] * h, axis=0, keepdims=True))
    y = jnp.concatenate(rows, axis=0) + b2     # (out_dim, BM)

    o_ref[...] = y.astype(o_ref.dtype)


def mlp_forward(x, w1, b1, w2, b2, *, block_m=2048):
    """x: (N, 2); w1: (2, H); b1: (1, H); w2: (H, 2); b2: (1, 2)  ->  (N, 2)."""
    N, in_dim = x.shape
    H = w1.shape[1]
    out_dim = w2.shape[1]

    # Lane-dense tiling: block along the (lane) batch axis in multiples of 128.
    block_m = max(128, (block_m // 128) * 128)
    block_m = min(block_m, pl.cdiv(N, 128) * 128)     # don't over-pad tiny batches
    n_pad = pl.cdiv(N, block_m) * block_m
    grid = (n_pad // block_m,)

    # One-time layout plumbing in the wrapper: batch -> lanes, weights column-sliceable.
    x_t = jnp.pad(x, ((0, n_pad - N), (0, 0))).T      # (in_dim, n_pad)
    w1_t = w1.T                                       # (H, in_dim)
    b1_c = b1.reshape(H, 1)                           # (H, 1)
    b2_c = b2.reshape(out_dim, 1)                     # (out_dim, 1)

    out_t = pl.pallas_call(
        mlp_kernel,
        out_shape=jax.ShapeDtypeStruct((out_dim, n_pad), x.dtype),
        grid_spec=pltpu.PrefetchScalarGridSpec(
            num_scalar_prefetch=0,
            grid=grid,
            in_specs=[
                pl.BlockSpec((in_dim, block_m), lambda i: (0, i)),   # x (batch in lanes)
                pl.BlockSpec((H, in_dim),       lambda i: (0, 0)),   # W1^T (full)
                pl.BlockSpec((H, 1),            lambda i: (0, 0)),   # b1   (full)
                pl.BlockSpec((H, out_dim),      lambda i: (0, 0)),   # W2   (full)
                pl.BlockSpec((out_dim, 1),      lambda i: (0, 0)),   # b2   (full)
            ],
            out_specs=pl.BlockSpec((out_dim, block_m), lambda i: (0, i)),
        ),
        compiler_params=pltpu.CompilerParams(
            dimension_semantics=("parallel",)),
    )(x_t, w1_t, b1_c, w2, b2_c)

    return out_t.T[:N, :]                             # back to (N, out_dim)


def init_params(key, hidden_dim, in_dim=2, out_dim=2, dtype=jnp.float32):
    # Deterministic init mimicking PyTorch Linear's U(-1/sqrt(fan_in), 1/sqrt(fan_in)).
    k1, k2, k3, k4 = jax.random.split(key, 4)
    bound1 = 1.0 / jnp.sqrt(in_dim)
    bound2 = 1.0 / jnp.sqrt(hidden_dim)
    w1 = jax.random.uniform(k1, (in_dim, hidden_dim), dtype, -bound1, bound1)
    b1 = jax.random.uniform(k2, (1, hidden_dim), dtype, -bound1, bound1)
    w2 = jax.random.uniform(k3, (hidden_dim, out_dim), dtype, -bound2, bound2)
    b2 = jax.random.uniform(k4, (1, out_dim), dtype, -bound2, bound2)
    return w1, b1, w2, b2


if __name__ == "__main__":
    key = jax.random.PRNGKey(0)
    kx, kp = jax.random.split(key)

    N, hidden_dim = 8, 32
    x = jax.random.normal(kx, (N, 2), dtype=jnp.float32)
    w1, b1, w2, b2 = init_params(kp, hidden_dim)

    out = mlp_forward(x, w1, b1, w2, b2)
    out = jax.block_until_ready(out)

    # Pure-JAX reference (full-precision matmuls so the f32 VPU kernel matches tightly).
    hp = jax.lax.Precision.HIGHEST
    ref = jnp.dot(jnp.tanh(jnp.dot(x, w1, precision=hp) + b1), w2, precision=hp) + b2

    assert out.shape == (N, 2)
    assert jnp.allclose(out, ref, atol=1e-5, rtol=1e-5)

    print("KERNEL_OK")
</pallas_src>

<mosaic_0001>
module attributes {stable_mosaic.version = 11 : i64} {
  func.func @mlp_kernel(%arg0: i32, %arg1: memref<2x128xf32, #tpu.memory_space<vmem>>, %arg2: memref<32x2xf32, #tpu.memory_space<vmem>>, %arg3: memref<32x1xf32, #tpu.memory_space<vmem>>, %arg4: memref<32x2xf32, #tpu.memory_space<vmem>>, %arg5: memref<2x1xf32, #tpu.memory_space<vmem>>, %arg6: memref<2x128xf32, #tpu.memory_space<vmem>>) attributes {dimension_semantics = [#tpu.dimension_semantics<parallel>], iteration_bounds = array<i64: 1>, scalar_prefetch = 0 : i64, scratch_operands = 0 : i64, tpu.core_type = #tpu.core_type<tc>, window_params = [{transform_indices = @transform_0, window_bounds = array<i64: 2, 128>}, {pipeline_mode = #tpu.pipeline_mode<synchronous>, transform_indices = @transform_1, window_bounds = array<i64: 32, 2>}, {pipeline_mode = #tpu.pipeline_mode<synchronous>, transform_indices = @transform_2, window_bounds = array<i64: 32, 1>}, {pipeline_mode = #tpu.pipeline_mode<synchronous>, transform_indices = @transform_3, window_bounds = array<i64: 32, 2>}, {pipeline_mode = #tpu.pipeline_mode<synchronous>, transform_indices = @transform_4, window_bounds = array<i64: 2, 1>}, {transform_indices = @transform_5, window_bounds = array<i64: 2, 128>}]} {
    %c0 = arith.constant 0 : index
    %c0_0 = arith.constant 0 : index
    %0 = vector.load %arg1[%c0, %c0_0] : memref<2x128xf32, #tpu.memory_space<vmem>>, vector<2x128xf32>
    %c0_1 = arith.constant 0 : index
    %c0_2 = arith.constant 0 : index
    %1 = vector.load %arg2[%c0_1, %c0_2] : memref<32x2xf32, #tpu.memory_space<vmem>>, vector<32x2xf32>
    %c0_3 = arith.constant 0 : index
    %c0_4 = arith.constant 0 : index
    %2 = vector.load %arg3[%c0_3, %c0_4] : memref<32x1xf32, #tpu.memory_space<vmem>>, vector<32x1xf32>
    %c0_5 = arith.constant 0 : index
    %c0_6 = arith.constant 0 : index
    %3 = vector.load %arg4[%c0_5, %c0_6] : memref<32x2xf32, #tpu.memory_space<vmem>>, vector<32x2xf32>
    %c0_7 = arith.constant 0 : index
    %c0_8 = arith.constant 0 : index
    %4 = vector.load %arg5[%c0_7, %c0_8] : memref<2x1xf32, #tpu.memory_space<vmem>>, vector<2x1xf32>
    %5 = vector.extract_strided_slice %1 {offsets = [0, 0], sizes = [32, 1], strides = [1, 1]} : vector<32x2xf32> to vector<32x1xf32>
    %6 = vector.extract_strided_slice %0 {offsets = [0, 0], sizes = [1, 128], strides = [1, 1]} : vector<2x128xf32> to vector<1x128xf32>
    %7 = vector.broadcast %5 : vector<32x1xf32> to vector<32x128xf32>
    %8 = vector.broadcast %6 : vector<1x128xf32> to vector<32x128xf32>
    %9 = arith.mulf %7, %8 : vector<32x128xf32>
    %10 = vector.broadcast %2 : vector<32x1xf32> to vector<32x128xf32>
    %11 = arith.addf %10, %9 : vector<32x128xf32>
    %12 = vector.extract_strided_slice %1 {offsets = [0, 1], sizes = [32, 1], strides = [1, 1]} : vector<32x2xf32> to vector<32x1xf32>
    %13 = vector.extract_strided_slice %0 {offsets = [1, 0], sizes = [1, 128], strides = [1, 1]} : vector<2x128xf32> to vector<1x128xf32>
    %14 = vector.broadcast %12 : vector<32x1xf32> to vector<32x128xf32>
    %15 = vector.broadcast %13 : vector<1x128xf32> to vector<32x128xf32>
    %16 = arith.mulf %14, %15 : vector<32x128xf32>
    %17 = arith.addf %11, %16 : vector<32x128xf32>
    %18 = math.tanh %17 : vector<32x128xf32>
    %19 = vector.extract_strided_slice %3 {offsets = [0, 0], sizes = [32, 1], strides = [1, 1]} : vector<32x2xf32> to vector<32x1xf32>
    %20 = vector.broadcast %19 : vector<32x1xf32> to vector<32x128xf32>
    %21 = arith.mulf %20, %18 : vector<32x128xf32>
    %cst = arith.constant dense<0.000000e+00> : vector<128xf32>
    %22 = vector.multi_reduction <add>, %21, %cst [0] : vector<32x128xf32> to vector<128xf32>
    %23 = vector.shape_cast %22 : vector<128xf32> to vector<1x128xf32>
    %24 = vector.extract_strided_slice %3 {offsets = [0, 1], sizes = [32, 1], strides = [1, 1]} : vector<32x2xf32> to vector<32x1xf32>
    %25 = vector.broadcast %24 : vector<32x1xf32> to vector<32x128xf32>
    %26 = arith.mulf %25, %18 : vector<32x128xf32>
    %cst_9 = arith.constant dense<0.000000e+00> : vector<128xf32>
    %27 = vector.multi_reduction <add>, %26, %cst_9 [0] : vector<32x128xf32> to vector<128xf32>
    %28 = vector.shape_cast %27 : vector<128xf32> to vector<1x128xf32>
    %29 = tpu.concatenate %23, %28 in 0 : vector<1x128xf32>, vector<1x128xf32> -> vector<2x128xf32>
    %30 = vector.broadcast %4 : vector<2x1xf32> to vector<2x128xf32>
    %31 = arith.addf %29, %30 : vector<2x128xf32>
    %c0_10 = arith.constant 0 : index
    %c0_11 = arith.constant 0 : index
    %32 = vector.load %arg6[%c0_10, %c0_11] : memref<2x128xf32, #tpu.memory_space<vmem>>, vector<2x128xf32>
    tpu.vector_store %arg6[%c0_10, %c0_11], %31 {strides = array<i32>} : memref<2x128xf32, #tpu.memory_space<vmem>>, vector<2x128xf32>,
    return
  }
  func.func @transform_0(%arg0: i32) -> (i32, i32) {
    %c0_i32 = arith.constant 0 : i32
    %c0_i32_0 = arith.constant 0 : i32
    return %c0_i32, %arg0 : i32, i32
  }
  func.func @transform_1(%arg0: i32) -> (i32, i32) {
    %c0_i32 = arith.constant 0 : i32
    %c0_i32_0 = arith.constant 0 : i32
    %c0_i32_1 = arith.constant 0 : i32
    return %c0_i32, %c0_i32_0 : i32, i32
  }
  func.func @transform_2(%arg0: i32) -> (i32, i32) {
    %c0_i32 = arith.constant 0 : i32
    %c0_i32_0 = arith.constant 0 : i32
    %c0_i32_1 = arith.constant 0 : i32
    return %c0_i32, %c0_i32_0 : i32, i32
  }
  func.func @transform_3(%arg0: i32) -> (i32, i32) {
    %c0_i32 = arith.constant 0 : i32
    %c0_i32_0 = arith.constant 0 : i32
    %c0_i32_1 = arith.constant 0 : i32
    return %c0_i32, %c0_i32_0 : i32, i32
  }
  func.func @transform_4(%arg0: i32) -> (i32, i32) {
    %c0_i32 = arith.constant 0 : i32
    %c0_i32_0 = arith.constant 0 : i32
    %c0_i32_1 = arith.constant 0 : i32
    return %c0_i32, %c0_i32_0 : i32, i32
  }
  func.func @transform_5(%arg0: i32) -> (i32, i32) {
    %c0_i32 = arith.constant 0 : i32
    %c0_i32_0 = arith.constant 0 : i32
    return %c0_i32, %arg0 : i32, i32
  }
}

</mosaic_0001>

<llo_original>
// kernel: tpu_custom_call.1
$region0: #{tpu_custom_call.1}
  #allocation0 [shape = 'u32[]', space=smem, size = 0x4, offset = 0x4, fixed_abs, tag = 'smem constant byte address 0x4 - core index']
  #allocation1 [shape = 'u32[144,128]{1,0:T(1,128)}', space=vmem, size = 0x12000, scoped, tag = 'internal scratch']
  %s0 = inlined_call_operand.vmem [shape: f32[2,128], index: 0, kind: input, shape index: {}]
  %s1 = inlined_call_operand.vmem [shape: f32[32,2], index: 1, kind: input, shape index: {}]
  %s2 = inlined_call_operand.vmem [shape: f32[32,1], index: 2, kind: input, shape index: {}]
  %s3 = inlined_call_operand.vmem [shape: f32[32,2], index: 3, kind: input, shape index: {}]
  %s4 = inlined_call_operand.vmem [shape: f32[2,1], index: 4, kind: input, shape index: {}]
  %s5 = inlined_call_operand.hbm [shape: f32[2,128], index: 5, kind: output, shape index: {}]
  %s6 = sld [smem:[#allocation0]]
  $region30: #{tpu_custom_call.1} parent=0
    _
  %s8 = ssub.s32 1, %s6
  %s9 = scalar_select 0, %s8, %s6
  $region1: #{tpu_custom_call.1} parent=0
    #allocation2 [shape = 'u8[1024]{0}', space=vmem, size = 0x400, scoped, tag = 'output window, operand 0, single buffered']
    #allocation3 [shape = 's32[1]{0}', space=sflag, size = 0x4, scoped, tag = 'scoped memory for tpu_custom_call.1']
    %10 = vsyncpa [#allocation3], 0
    // Predicated region
    $region2: #{tpu_custom_call.1} parent=1 // pred_check
      _
    $region3: #{tpu_custom_call.1} parent=1 // pred_check_branch
      %12 = sbr.rel (0) target = $region5
    $region4: #{tpu_custom_call.1} parent=1 // pred_region
      _
    $region5: #{tpu_custom_call.1} parent=1 // pred_fallthru
      _
    // Predicated region
    $region6: #{tpu_custom_call.1} parent=1 // pred_check
      _
    $region7: #{tpu_custom_call.1} parent=1 // pred_check_branch
      %14 = sbr.rel (0) target = $region9
    $region8: #{tpu_custom_call.1} parent=1 // pred_region
      _
    $region9: #{tpu_custom_call.1} parent=1 // pred_fallthru
      _
    // Predicated region
    $region10: #{tpu_custom_call.1} parent=1 // pred_check
      _
    $region11: #{tpu_custom_call.1} parent=1 // pred_check_branch
      %16 = sbr.rel (0) target = $region13
    $region12: #{tpu_custom_call.1} parent=1 // pred_region
      _
    $region13: #{tpu_custom_call.1} parent=1 // pred_fallthru
      _
    // Predicated region
    $region14: #{tpu_custom_call.1} parent=1 // pred_check
      _
    $region15: #{tpu_custom_call.1} parent=1 // pred_check_branch
      %18 = sbr.rel (0) target = $region17
    $region16: #{tpu_custom_call.1} parent=1 // pred_region
      _
    $region17: #{tpu_custom_call.1} parent=1 // pred_fallthru
      _
    // Predicated region
    $region18: #{tpu_custom_call.1} parent=1 // pred_check
      _
    $region19: #{tpu_custom_call.1} parent=1 // pred_check_branch
      %20 = sbr.rel (0) target = $region21
    $region20: #{tpu_custom_call.1} parent=1 // pred_region
      _
    $region21: #{tpu_custom_call.1} parent=1 // pred_fallthru
      _
    %v21 = vld [vmem:[%s0] sm:$0x3]
    %v22 = vld [vmem:[%s1] sm:$0xff]
    %v23 = vld [vmem:[%s1 + $0x8] sm:$0xff]
    %v24 = vld [vmem:[%s1 + $0x10] sm:$0xff]
    %v25 = vld [vmem:[%s1 + $0x18] sm:$0xff]
    %v26 = vld [vmem:[%s2] sm:$0xff]
    %v27 = vld [vmem:[%s2 + $0x8] sm:$0xff]
    %v28 = vld [vmem:[%s2 + $0x10] sm:$0xff]
    %v29 = vld [vmem:[%s2 + $0x18] sm:$0xff]
    %v30 = vld [vmem:[%s3] sm:$0xff]
    %v31 = vld [vmem:[%s3 + $0x8] sm:$0xff]
    %v32 = vld [vmem:[%s3 + $0x10] sm:$0xff]
    %v33 = vld [vmem:[%s3 + $0x18] sm:$0xff]
    %v34 = vld [vmem:[%s4] sm:$0x3]
    %36 = vset.pattern.permute.xlu0 0
    %37 = vperm.xlu0 %36, %v22
    %v38 = vpop.permute.xlu0 %37
    %41 = vset.pattern.permute.xlu0 0
    %42 = vperm.xlu0 %41, %v23
    %v43 = vpop.permute.xlu0 %42
    %46 = vset.pattern.permute.xlu0 0
    %47 = vperm.xlu0 %46, %v24
    %v48 = vpop.permute.xlu0 %47
    %51 = vset.pattern.permute.xlu0 0
    %52 = vperm.xlu0 %51, %v25
    %v53 = vpop.permute.xlu0 %52
    %v55 = vlaneseq
    %v56 = vshrl.u32 %v55, 7
    %v57 = vsub.s32 0, %v56
    %v58 = vrot.slane %v21, %v57
    %v59 = vmul.f32 %v38, %v58
    %v60 = vmul.f32 %v43, %v58
    %v61 = vmul.f32 %v48, %v58
    %v62 = vmul.f32 %v53, %v58
    %64 = vset.pattern.permute.xlu0 0
    %65 = vperm.xlu0 %64, %v26
    %v66 = vpop.permute.xlu0 %65
    %69 = vset.pattern.permute.xlu0 0
    %70 = vperm.xlu0 %69, %v27
    %v71 = vpop.permute.xlu0 %70
    %74 = vset.pattern.permute.xlu0 0
    %75 = vperm.xlu0 %74, %v28
    %v76 = vpop.permute.xlu0 %75
    %79 = vset.pattern.permute.xlu0 0
    %80 = vperm.xlu0 %79, %v29
    %v81 = vpop.permute.xlu0 %80
    %v83 = vadd.f32 %v66, %v59
    %v84 = vadd.f32 %v71, %v60
    %v85 = vadd.f32 %v76, %v61
    %v86 = vadd.f32 %v81, %v62
    %87 = vset.pattern.permute.xlu0 1
    %88 = vperm.xlu0 %87, %v22
    %v89 = vpop.permute.xlu0 %88
    %91 = vset.pattern.permute.xlu0 1
    %92 = vperm.xlu0 %91, %v23
    %v93 = vpop.permute.xlu0 %92
    %95 = vset.pattern.permute.xlu0 1
    %96 = vperm.xlu0 %95, %v24
    %v97 = vpop.permute.xlu0 %96
    %99 = vset.pattern.permute.xlu0 1
    %100 = vperm.xlu0 %99, %v25
    %v101 = vpop.permute.xlu0 %100
    %v103 = vlaneseq
    %v104 = vshrl.u32 %v103, 7
    %v105 = vsub.s32 1, %v104
    %v106 = vrot.slane %v21, %v105
    %v107 = vmul.f32 %v89, %v106
    %v108 = vmul.f32 %v93, %v106
    %v109 = vmul.f32 %v97, %v106
    %v110 = vmul.f32 %v101, %v106
    %v111 = vadd.f32 %v83, %v107
    %v112 = vadd.f32 %v84, %v108
    %v113 = vadd.f32 %v85, %v109
    %v114 = vadd.f32 %v86, %v110
    %v115 = vtanh.pop %v111
    %v116 = vtanh.pop %v112
    %v117 = vtanh.pop %v113
    %v118 = vtanh.pop %v114
    %120 = vset.pattern.permute.xlu0 0
    %121 = vperm.xlu0 %120, %v30
    %v122 = vpop.permute.xlu0 %121
    %125 = vset.pattern.permute.xlu0 0
    %126 = vperm.xlu0 %125, %v31
    %v127 = vpop.permute.xlu0 %126
    %130 = vset.pattern.permute.xlu0 0
    %131 = vperm.xlu0 %130, %v32
    %v132 = vpop.permute.xlu0 %131
    %135 = vset.pattern.permute.xlu0 0
    %136 = vperm.xlu0 %135, %v33
    %v137 = vpop.permute.xlu0 %136
    %v139 = vmul.f32 %v122, %v115
    %v140 = vmul.f32 %v127, %v116
    %v141 = vmul.f32 %v132, %v117
    %v142 = vmul.f32 %v137, %v118
    %v143 = vadd.f32 %v139, %v140
    %v144 = vadd.f32 %v143, %v141
    %v145 = vadd.f32 %v144, %v142
    %v146 = vrot.slane %v145, 4
    %v147 = vadd.f32 %v145, %v146
    %v148 = vrot.slane %v147, 2
    %v149 = vadd.f32 %v147, %v148
    %v150 = vrot.slane %v149, 1
    %v151 = vadd.f32 %v149, %v150
    %152 = vset.pattern.permute.xlu0 1
    %153 = vperm.xlu0 %152, %v30
    %v154 = vpop.permute.xlu0 %153
    %156 = vset.pattern.permute.xlu0 1
    %157 = vperm.xlu0 %156, %v31
    %v158 = vpop.permute.xlu0 %157
    %160 = vset.pattern.permute.xlu0 1
    %161 = vperm.xlu0 %160, %v32
    %v162 = vpop.permute.xlu0 %161
    %164 = vset.pattern.permute.xlu0 1
    %165 = vperm.xlu0 %164, %v33
    %v166 = vpop.permute.xlu0 %165
    %v168 = vmul.f32 %v154, %v115
    %v169 = vmul.f32 %v158, %v116
    %v170 = vmul.f32 %v162, %v117
    %v171 = vmul.f32 %v166, %v118
    %v172 = vadd.f32 %v168, %v169
    %v173 = vadd.f32 %v172, %v170
    %v174 = vadd.f32 %v173, %v171
    %v175 = vrot.slane %v174, 4
    %v176 = vadd.f32 %v174, %v175
    %v177 = vrot.slane %v176, 2
    %v178 = vadd.f32 %v176, %v177
    %v179 = vrot.slane %v178, 1
    %v180 = vadd.f32 %v178, %v179
    %vm181 = vcmask 1040384
    %v182 = vsel %vm181, %v151, %v180
    %184 = vset.pattern.permute.xlu0 0
    %185 = vperm.xlu0 %184, %v34
    %v186 = vpop.permute.xlu0 %185
    %v188 = vadd.f32 %v182, %v186
    %189 = vst [vmem:[#allocation2] sm:$0x3] %v188
    // Predicated region
    $region22: #{tpu_custom_call.1} parent=1 // pred_check
      _
    $region23: #{tpu_custom_call.1} parent=1 // pred_check_branch
      %191 = sbr.rel (0) target = $region25
    $region24: #{tpu_custom_call.1} parent=1 // pred_region
      %s193 = ssub.s32 32, 32
      %194 = vsyncadd [#allocation3], %s193
      %s196 = sshll.u32 [#allocation2], 4
      %s197 = int_to_ptr.vmem [resolvable:$true] %s196
      %199 = dma.vmem_to_hbm [thread:$0]  %s197, 32, %s5, [#allocation3]
    $region25: #{tpu_custom_call.1} parent=1 // pred_fallthru
      _
    // Predicated region
    $region26: #{tpu_custom_call.1} parent=1 // pred_check
      _
    $region27: #{tpu_custom_call.1} parent=1 // pred_check_branch
      %201 = sbr.rel (0) target = $region29
    $region28: #{tpu_custom_call.1} parent=1 // pred_region
      %202 = dma.done [#allocation3], 32
    $region29: #{tpu_custom_call.1} parent=1 // pred_fallthru
      _
    %203 = vsyncpa [#allocation3], 1

</llo_original>
